<compile_context>
chip_gen: v5e
topology: v5e:2x2
jax: 0.10.0
libtpu: 0.0.40
codegen_flags: <defaults>
</compile_context>

<pallas_src>
import math

import jax
import jax.numpy as jnp
from jax.experimental import pallas as pl
from jax.experimental.pallas import tpu as pltpu


def _build_pe(d_model: int, max_len: int = 300) -> jnp.ndarray:
    """Deterministic sinusoidal positional-encoding buffer, shape [1, max_len, d_model]."""
    position = jnp.arange(0, max_len, dtype=jnp.float32)[:, None]            # [max_len, 1]
    div_term = jnp.exp(
        jnp.arange(0, d_model, 2, dtype=jnp.float32) * (-math.log(10000.0) / d_model)
    )                                                                          # [ceil(d/2)]
    angles = position * div_term                                               # [max_len, ceil(d/2)]
    pe = jnp.zeros((max_len, d_model), dtype=jnp.float32)
    pe = pe.at[:, 0::2].set(jnp.sin(angles))
    if d_model % 2 != 0:
        pe = pe.at[:, 1::2].set(jnp.cos(angles)[:, :-1])
    else:
        pe = pe.at[:, 1::2].set(jnp.cos(angles))
    return pe[None, :, :]                                                      # [1, max_len, d_model]


def _add_pe_kernel(x_ref, pe_ref, o_ref):
    # x_ref: [TILE_S, B*D] tile, pe_ref: [1, B*D] resident tile -> broadcast add over S.
    o_ref[...] = x_ref[...] + pe_ref[...]


def _choose_tile_s(S: int, row_bytes: int, target_bytes: int = 2 * 1024 * 1024) -> int:
    """Pick an S-tile so one x tile is ~2 MiB (good DMA/compute overlap) while keeping
    the sublane dim a multiple of 8 (or the full extent)."""
    if S <= 8:
        return S
    tile = max(1, target_bytes // max(row_bytes, 1))
    if tile >= S:
        return S
    # Round down to a multiple of 8 so the (sublane) block dim is tiling-friendly.
    tile = max(8, (tile // 8) * 8)
    return min(tile, S)


def positional_encoding_forward(x: jnp.ndarray, pe: jnp.ndarray) -> jnp.ndarray:
    """x: [S, B, D]; pe: [1, max_len, D]. Returns x + pe[:, :B] (PyTorch-exact semantics)."""
    S, B, D = x.shape
    BD = B * D
    itemsize = jnp.dtype(x.dtype).itemsize

    # Glue in plain JAX: slice pe exactly like the PyTorch forward, match x's dtype
    # (halves pe DMA bytes / avoids mixed-precision promotion for bf16 activations),
    # and flatten to a lane-dense 2-D layout.
    pe_slice = pe[:, :B, :].astype(x.dtype).reshape(1, BD)   # [1, B*D]
    x2 = x.reshape(S, BD)                                    # [S, B*D]

    tile_s = _choose_tile_s(S, BD * itemsize)
    grid = (pl.cdiv(S, tile_s),)

    out2 = pl.pallas_call(
        _add_pe_kernel,
        out_shape=jax.ShapeDtypeStruct((S, BD), x.dtype),
        grid_spec=pltpu.PrefetchScalarGridSpec(
            num_scalar_prefetch=0,
            grid=grid,
            in_specs=[
                # x: tiled over S -> software-pipelined double-buffered DMA.
                pl.BlockSpec((tile_s, BD), lambda i: (i, 0)),
                # pe: constant block index across the grid -> DMA'd once, held resident.
                pl.BlockSpec((1, BD), lambda i: (0, 0)),
            ],
            out_specs=pl.BlockSpec((tile_s, BD), lambda i: (i, 0)),
        ),
        compiler_params=pltpu.CompilerParams(
            # No reduction / carried state across S -> parallel (megacore on v7x).
            dimension_semantics=("parallel",),
        ),
        cost_estimate=pl.CostEstimate(
            flops=S * BD,
            transcendentals=0,
            bytes_accessed=2 * S * BD * itemsize + BD * itemsize,
        ),
    )(x2, pe_slice)

    return out2.reshape(S, B, D)


if __name__ == "__main__":
    # Small shapes consistent with the forward: x is [seq_len, batch, embed].
    # B*D = 128 so the flattened layout is exactly one lane-width wide.
    S, B, D = 16, 2, 64
    key = jax.random.PRNGKey(0)
    x = jax.random.normal(key, (S, B, D), dtype=jnp.float32)

    pe = _build_pe(d_model=D, max_len=300)

    out = positional_encoding_forward(x, pe)
    out = jax.block_until_ready(out)

    # Reference check in plain JAX (same semantics as the PyTorch forward, dropout p=0).
    ref = x + pe[:, :B, :]
    assert out.shape == (S, B, D)
    assert jnp.allclose(out, ref, atol=1e-6), "mismatch vs reference"

    print("KERNEL_OK")
</pallas_src>

<mosaic_0001>
module attributes {stable_mosaic.version = 11 : i64} {
  func.func @_add_pe_kernel(%arg0: i32, %arg1: memref<16x128xf32, #tpu.memory_space<vmem>>, %arg2: memref<1x128xf32, #tpu.memory_space<vmem>>, %arg3: memref<16x128xf32, #tpu.memory_space<vmem>>) attributes {dimension_semantics = [#tpu.dimension_semantics<parallel>], iteration_bounds = array<i64: 1>, scalar_prefetch = 0 : i64, scratch_operands = 0 : i64, tpu.core_type = #tpu.core_type<tc>, window_params = [{transform_indices = @transform_0, window_bounds = array<i64: 16, 128>}, {pipeline_mode = #tpu.pipeline_mode<synchronous>, transform_indices = @transform_1, window_bounds = array<i64: 1, 128>}, {transform_indices = @transform_2, window_bounds = array<i64: 16, 128>}]} {
    %c0 = arith.constant 0 : index
    %c0_0 = arith.constant 0 : index
    %0 = vector.load %arg1[%c0, %c0_0] : memref<16x128xf32, #tpu.memory_space<vmem>>, vector<16x128xf32>
    %c0_1 = arith.constant 0 : index
    %c0_2 = arith.constant 0 : index
    %1 = vector.load %arg2[%c0_1, %c0_2] : memref<1x128xf32, #tpu.memory_space<vmem>>, vector<1x128xf32>
    %2 = vector.broadcast %1 : vector<1x128xf32> to vector<16x128xf32>
    %3 = arith.addf %0, %2 : vector<16x128xf32>
    %c0_3 = arith.constant 0 : index
    %c0_4 = arith.constant 0 : index
    %4 = vector.load %arg3[%c0_3, %c0_4] : memref<16x128xf32, #tpu.memory_space<vmem>>, vector<16x128xf32>
    tpu.vector_store %arg3[%c0_3, %c0_4], %3 {strides = array<i32>} : memref<16x128xf32, #tpu.memory_space<vmem>>, vector<16x128xf32>,
    return
  }
  func.func @transform_0(%arg0: i32) -> (i32, i32) {
    %c0_i32 = arith.constant 0 : i32
    %c0_i32_0 = arith.constant 0 : i32
    return %arg0, %c0_i32 : i32, i32
  }
  func.func @transform_1(%arg0: i32) -> (i32, i32) {
    %c0_i32 = arith.constant 0 : i32
    %c0_i32_0 = arith.constant 0 : i32
    %c0_i32_1 = arith.constant 0 : i32
    return %c0_i32, %c0_i32_0 : i32, i32
  }
  func.func @transform_2(%arg0: i32) -> (i32, i32) {
    %c0_i32 = arith.constant 0 : i32
    %c0_i32_0 = arith.constant 0 : i32
    return %arg0, %c0_i32 : i32, i32
  }
}

</mosaic_0001>

<llo_original>
// kernel: tpu_custom_call.1
$region0: #{tpu_custom_call.1}
  #allocation0 [shape = 'u32[]', space=smem, size = 0x4, offset = 0x4, fixed_abs, tag = 'smem constant byte address 0x4 - core index']
  #allocation1 [shape = 'u32[72,128]{1,0:T(1,128)}', space=vmem, size = 0x9000, scoped, tag = 'internal scratch']
  %s0 = inlined_call_operand.hbm [shape: f32[16,128], index: 0, kind: input, shape index: {}]
  %s1 = inlined_call_operand.hbm [shape: f32[1,128], index: 1, kind: input, shape index: {}]
  %s2 = inlined_call_operand.hbm [shape: f32[16,128], index: 2, kind: output, shape index: {}]
  %s3 = sld [smem:[#allocation0]]
  $region26: #{tpu_custom_call.1} parent=0
    _
  %s5 = ssub.s32 1, %s3
  %s6 = scalar_select 0, %s5, %s3
  $region1: #{tpu_custom_call.1} parent=0
    #allocation2 [shape = 'u8[8192]{0}', space=vmem, size = 0x2000, scoped, tag = 'input window, operand 0, single buffered']
    #allocation3 [shape = 's32[1]{0}', space=sflag, size = 0x4, scoped, tag = 'scoped memory for tpu_custom_call.1']
    #allocation4 [shape = 's32[1]{0}', space=sflag, size = 0x4, scoped, tag = 'scoped memory for tpu_custom_call.1']
    #allocation5 [shape = 'u8[512]{0}', space=vmem, size = 0x400, scoped, tag = 'input window, operand 1, single buffered']
    #allocation6 [shape = 's32[1]{0}', space=sflag, size = 0x4, scoped, tag = 'scoped memory for tpu_custom_call.1']
    #allocation7 [shape = 'u8[8192]{0}', space=vmem, size = 0x2000, scoped, tag = 'output window, operand 0, single buffered']
    %7 = vsyncpa [#allocation3], 0
    %8 = vsyncpa [#allocation6], 0
    %9 = vsyncpa [#allocation4], 0
    // Predicated region
    $region2: #{tpu_custom_call.1} parent=1 // pred_check
      _
    $region3: #{tpu_custom_call.1} parent=1 // pred_check_branch
      %11 = sbr.rel (0) target = $region5
    $region4: #{tpu_custom_call.1} parent=1 // pred_region
      %13 = vsyncadd [#allocation3], 0
      %s14 = sshll.u32 %s0, 4
      %s15 = int_to_ptr.hbm [resolvable:$true] %s14
      %s16 = sshll.u32 [#allocation2], 4
      %s17 = int_to_ptr.vmem [resolvable:$true] %s16
      %22 = dma.hbm_to_vmem [thread:$0]  %s15, 256, %s17, [#allocation3], 128, 128, 8
    $region5: #{tpu_custom_call.1} parent=1 // pred_fallthru
      _
    // Predicated region
    $region6: #{tpu_custom_call.1} parent=1 // pred_check
      _
    $region7: #{tpu_custom_call.1} parent=1 // pred_check_branch
      %24 = sbr.rel (0) target = $region9
    $region8: #{tpu_custom_call.1} parent=1 // pred_region
      %26 = vsyncadd [#allocation6], 0
      %s28 = sshll.u32 %s1, 4
      %s29 = int_to_ptr.hbm [resolvable:$true] %s28
      %s30 = sshll.u32 [#allocation5], 4
      %s31 = int_to_ptr.vmem [resolvable:$true] %s30
      %33 = dma.hbm_to_vmem [thread:$0]  %s29, 16, %s31, [#allocation6]
    $region9: #{tpu_custom_call.1} parent=1 // pred_fallthru
      _
    // Predicated region
    $region10: #{tpu_custom_call.1} parent=1 // pred_check
      _
    $region11: #{tpu_custom_call.1} parent=1 // pred_check_branch
      %35 = sbr.rel (0) target = $region13
    $region12: #{tpu_custom_call.1} parent=1 // pred_region
      %37 = dma.done [#allocation3], 256
    $region13: #{tpu_custom_call.1} parent=1 // pred_fallthru
      _
    // Predicated region
    $region14: #{tpu_custom_call.1} parent=1 // pred_check
      _
    $region15: #{tpu_custom_call.1} parent=1 // pred_check_branch
      %39 = sbr.rel (0) target = $region17
    $region16: #{tpu_custom_call.1} parent=1 // pred_region
      %41 = dma.done [#allocation6], 16
    $region17: #{tpu_custom_call.1} parent=1 // pred_fallthru
      _
    %v42 = vld [vmem:[#allocation2] sm:$0xff]
    %v43 = vld [vmem:[#allocation2 + $0x8] sm:$0xff]
    %v44 = vld [vmem:[#allocation5] sm:$0x1]
    %v46 = vperm.slane %v44, 0
    %v48 = vadd.f32 %v42, %v46
    %v49 = vadd.f32 %v43, %v46
    %50 = vst [vmem:[#allocation7] sm:$0xff] %v48
    %51 = vst [vmem:[#allocation7 + $0x8] sm:$0xff] %v49
    // Predicated region
    $region18: #{tpu_custom_call.1} parent=1 // pred_check
      _
    $region19: #{tpu_custom_call.1} parent=1 // pred_check_branch
      %53 = sbr.rel (0) target = $region21
    $region20: #{tpu_custom_call.1} parent=1 // pred_region
      %55 = vsyncadd [#allocation4], 0
      %s56 = sshll.u32 [#allocation7], 4
      %s57 = int_to_ptr.vmem [resolvable:$true] %s56
      %s58 = sshll.u32 %s2, 4
      %s59 = int_to_ptr.hbm [resolvable:$true] %s58
      %64 = dma.vmem_to_hbm [thread:$0]  %s57, 256, %s59, [#allocation4], 128, 128, 8
    $region21: #{tpu_custom_call.1} parent=1 // pred_fallthru
      _
    // Predicated region
    $region22: #{tpu_custom_call.1} parent=1 // pred_check
      _
    $region23: #{tpu_custom_call.1} parent=1 // pred_check_branch
      %66 = sbr.rel (0) target = $region25
    $region24: #{tpu_custom_call.1} parent=1 // pred_region
      %68 = dma.done [#allocation4], 256
    $region25: #{tpu_custom_call.1} parent=1 // pred_fallthru
      _
    %69 = vsyncpa [#allocation3], 1
    %70 = vsyncpa [#allocation6], 1
    %71 = vsyncpa [#allocation4], 1

</llo_original>
